<compile_context>
chip_gen: v7x
topology: tpu7x:2x2x1
jax: 0.10.0
libtpu: 0.0.40
codegen_flags: <defaults>
</compile_context>

<pallas_src>
import functools
import math

import numpy as np

import jax
import jax.numpy as jnp
from jax.experimental import pallas as pl
from jax.experimental.pallas import tpu as pltpu

D_MODEL = 32
N_HEADS = 4
D_FF = 64
SEQ = 8
BATCH = 2
EPS = 1e-5
NEG_INF = -1e30


def _layer_norm(h, gamma, beta):
    mu = jnp.mean(h, axis=-1, keepdims=True)
    var = jnp.mean((h - mu) ** 2, axis=-1, keepdims=True)
    return (h - mu) * jax.lax.rsqrt(var + EPS) * gamma + beta


@functools.lru_cache(maxsize=None)
def _build_masks(batch, seq, d_model, n_heads):
    """Constant masks, built once host-side (numpy) and packed into one (3, HM, HM) tile."""
    M = batch * seq
    H = n_heads
    HM = H * M
    dh = d_model // H
    consts = np.zeros((3, HM, HM), np.float32)
    # [0] head-stack column mask: rows [h*M, (h+1)*M) keep only head h's d_head columns.
    r = np.arange(HM)[:, None]
    c = np.arange(d_model)[None, :]
    consts[0, :, :d_model] = (r // M == c // dh).astype(np.float32)
    # [1] block-diagonal ones: per-head softmax denominators broadcast via one MXU matmul.
    rr = np.arange(HM)[:, None]
    cc = np.arange(HM)[None, :]
    consts[1] = (rr // M == cc // M).astype(np.float32)
    # [2] additive cross-batch mask (rows 0..M-1): 0 within the same batch element, -1e30 otherwise.
    qi = np.arange(M)[:, None]
    kc = np.arange(HM)[None, :]
    consts[2, :M, :] = np.where((qi // seq) == ((kc % M) // seq), 0.0, NEG_INF).astype(np.float32)
    return consts


def encoder_layer_kernel(x_ref, w_attn_ref, w1_ref, w2_ref, vec_ref, b1_ref, consts_ref,
                         o_ref, *, batch, seq, n_heads, mm_dtype):
    B, S, H = batch, seq, n_heads
    M = B * S                                   # fused (batch, seq) rows
    x = x_ref[...]                              # (M, D) float32
    D = x.shape[-1]
    f32 = jnp.float32

    # packed (9, 1, D) bias / layernorm vectors -> nine (1, D) views (leading-dim index)
    bq, bk, bv, bo, b2, g1, be1, g2, be2 = [vec_ref[i] for i in range(9)]
    b1 = b1_ref[...]                            # (1, D_FF)

    # precomputed constants: one packed operand, no in-kernel iota / div / cmp construction
    stack_mask = consts_ref[0, :, :D]           # (HM, D)  head-stack column mask
    block_ones = consts_ref[1, :, :]            # (HM, HM) block-diagonal ones
    add_mask = consts_ref[2, :M, :]             # (M, HM)  additive 0 / -1e30 cross-batch mask

    # ---- Q / K / V projections over all B*S rows (1/sqrt(dh) pre-folded into Wq, bq) ----
    xm = x.astype(mm_dtype)                     # bf16 on v6e/v7x, f32 on v5e; f32 accumulation
    q = jnp.dot(xm, w_attn_ref[0], preferred_element_type=f32) + bq
    k = jnp.dot(xm, w_attn_ref[1], preferred_element_type=f32) + bk
    v = jnp.dot(xm, w_attn_ref[2], preferred_element_type=f32) + bv

    # ---- head-stacked K / V: rows [h*M, (h+1)*M) keep only head h's columns ----
    k_stack = jnp.tile(k, (H, 1)) * stack_mask  # (HM, D)
    v_stack = jnp.tile(v, (H, 1)) * stack_mask  # (HM, D)

    # ---- all (batch, head) scores in ONE matmul: (M, H*M) lane-dense block ----
    s = jnp.einsum('qd,kd->qk', q.astype(mm_dtype), k_stack.astype(mm_dtype),
                   preferred_element_type=f32)
    s = s + add_mask                            # queries attend only within their own batch element

    # ---- ONE softmax for every batch/head.
    # NOTE: the shared row-wide max shift is exact ONLY because the same shifted `p`
    # feeds both the numerator and the block-diagonal denominator matmul below.
    # Masked entries rely on exp(-1e30 - m) flushing to 0.0; every row has >= S unmasked
    # keys, so m is always finite (a fully-masked row would produce NaN).
    m = jnp.max(s, axis=-1, keepdims=True)
    p = jnp.exp(s - m)                                          # masked entries -> 0
    denom = jnp.dot(p, block_ones, preferred_element_type=f32)  # per-head denominators, (M, HM)
    p = p * pl.reciprocal(denom, approx=False)                  # exact: EUP has ample slack here

    # ---- context for all heads in ONE matmul; heads land in disjoint columns ----
    ctx = jnp.dot(p.astype(mm_dtype), v_stack.astype(mm_dtype),
                  preferred_element_type=f32)                   # (M, D)

    # ---- output projection, residual 1, layernorm 1 ----
    # TODO(synk): dropout layers are the identity here (eval mode); train-mode RNG
    # masking is not implemented.
    attn = jnp.dot(ctx.astype(mm_dtype), w_attn_ref[3], preferred_element_type=f32) + bo
    h1 = _layer_norm(x + attn, g1, be1)

    # ---- feed-forward, residual 2, layernorm 2 ----
    f = jnp.dot(h1.astype(mm_dtype), w1_ref[...], preferred_element_type=f32) + b1
    f = jnp.maximum(f, 0.0)
    f = jnp.dot(f.astype(mm_dtype), w2_ref[...], preferred_element_type=f32) + b2
    out = _layer_norm(h1 + f, g2, be2)

    o_ref[...] = out.astype(o_ref.dtype)


def transformer_encoder_layer(x, params, *, n_heads=N_HEADS, matmul_dtype=jnp.float32):
    """Pallas forward pass for the TransformerEncoderLayer (eval mode)."""
    B, S, D = x.shape
    dh = D // n_heads
    scale = 1.0 / math.sqrt(dh)

    # host/XLA-side parameter prep (tiny, runs under jit):
    #   fold the attention scale into Wq/bq, stack the four (D, D) attention weights into
    #   one operand, cast matmul weights to the MXU input dtype once, pack the nine (1, D)
    #   bias / layernorm vectors into one buffer.
    wq = params['wq'] * scale
    bq = params['bq'] * scale
    w_attn = jnp.stack([wq, params['wk'], params['wv'], params['wo']],
                       axis=0).astype(matmul_dtype)             # (4, D, D)
    w1 = params['w1'].astype(matmul_dtype)                      # (D, D_FF)
    w2 = params['w2'].astype(matmul_dtype)                      # (D_FF, D)
    vec = jnp.stack([bq, params['bk'], params['bv'], params['bo'], params['b2'],
                     params['g1'], params['be1'], params['g2'], params['be2']],
                    axis=0)                                     # (9, 1, D) float32

    consts = _build_masks(B, S, D, n_heads)                     # (3, HM, HM) float32, jit constant
    x2d = x.reshape(B * S, D)                                   # fold batch into rows

    kernel = functools.partial(encoder_layer_kernel, batch=B, seq=S, n_heads=n_heads,
                               mm_dtype=matmul_dtype)
    vmem = pl.BlockSpec(memory_space=pltpu.MemorySpace.VMEM)
    out2d = pl.pallas_call(
        kernel,
        out_shape=jax.ShapeDtypeStruct((B * S, D), x.dtype),
        in_specs=[vmem] * 7,
        out_specs=vmem,
    )(x2d, w_attn, w1, w2, vec, params['b1'], consts)
    return out2d.reshape(B, S, D)


def _pick_matmul_dtype():
    """bf16 MXU inputs on v6e/v7x (bf16-native MXU); f32 on v5e / older / unknown."""
    try:
        kind = jax.devices()[0].device_kind.lower()
    except Exception:
        return jnp.float32
    if ("v6" in kind) or ("v7" in kind):
        return jnp.bfloat16
    return jnp.float32


def init_params(key, d_model=D_MODEL, d_ff=D_FF):
    ks = jax.random.split(key, 6)
    s = 0.05
    return {
        'wq': jax.random.normal(ks[0], (d_model, d_model), jnp.float32) * s,
        'bq': jnp.zeros((1, d_model), jnp.float32),
        'wk': jax.random.normal(ks[1], (d_model, d_model), jnp.float32) * s,
        'bk': jnp.zeros((1, d_model), jnp.float32),
        'wv': jax.random.normal(ks[2], (d_model, d_model), jnp.float32) * s,
        'bv': jnp.zeros((1, d_model), jnp.float32),
        'wo': jax.random.normal(ks[3], (d_model, d_model), jnp.float32) * s,
        'bo': jnp.full((1, d_model), 0.01, jnp.float32),
        'w1': jax.random.normal(ks[4], (d_model, d_ff), jnp.float32) * s,
        'b1': jnp.full((1, d_ff), 0.01, jnp.float32),
        'w2': jax.random.normal(ks[5], (d_ff, d_model), jnp.float32) * s,
        'b2': jnp.full((1, d_model), 0.01, jnp.float32),
        'g1': jnp.ones((1, d_model), jnp.float32),
        'be1': jnp.zeros((1, d_model), jnp.float32),
        'g2': jnp.ones((1, d_model), jnp.float32),
        'be2': jnp.zeros((1, d_model), jnp.float32),
    }


def reference_forward(x, p, n_heads=N_HEADS):
    """Pure-JAX f32 reference mirroring the PyTorch module (dropout = identity)."""
    B, S, D = x.shape
    dh = D // n_heads

    def ln(h, g, b):
        mu = h.mean(-1, keepdims=True)
        var = ((h - mu) ** 2).mean(-1, keepdims=True)
        return (h - mu) / jnp.sqrt(var + EPS) * g + b

    q = x @ p['wq'] + p['bq']
    k = x @ p['wk'] + p['bk']
    v = x @ p['wv'] + p['bv']
    qh = q.reshape(B, S, n_heads, dh).transpose(0, 2, 1, 3)
    kh = k.reshape(B, S, n_heads, dh).transpose(0, 2, 1, 3)
    vh = v.reshape(B, S, n_heads, dh).transpose(0, 2, 1, 3)
    s = jnp.einsum('bhqd,bhkd->bhqk', qh, kh) / math.sqrt(dh)
    p_attn = jax.nn.softmax(s, axis=-1)
    o = jnp.einsum('bhqk,bhkd->bhqd', p_attn, vh)
    o = o.transpose(0, 2, 1, 3).reshape(B, S, D)
    attn = o @ p['wo'] + p['bo']
    h1 = ln(x + attn, p['g1'], p['be1'])
    f = jnp.maximum(h1 @ p['w1'] + p['b1'], 0.0) @ p['w2'] + p['b2']
    return ln(h1 + f, p['g2'], p['be2'])


if __name__ == "__main__":
    key = jax.random.PRNGKey(0)
    k_x, k_p = jax.random.split(key)
    x = jax.random.normal(k_x, (BATCH, SEQ, D_MODEL), jnp.float32)
    params = init_params(k_p)

    mm_dtype = _pick_matmul_dtype()
    fwd = jax.jit(functools.partial(transformer_encoder_layer, matmul_dtype=mm_dtype))
    out = jax.block_until_ready(fwd(x, params))

    ref = reference_forward(x, params)
    assert out.shape == (BATCH, SEQ, D_MODEL)
    err = float(jnp.max(jnp.abs(out - ref)))
    # f32 path: exact-reciprocal softmax -> near-f32 parity; bf16-MXU-input path (v6e/v7x)
    # keeps f32 accumulation + f32 elementwise, so a few e-3 absolute error is expected.
    tol = 2e-2 if jnp.dtype(mm_dtype) == jnp.dtype(jnp.bfloat16) else 1e-4
    assert err < tol, f"max err {err} (tol {tol})"
    print("KERNEL_OK")
</pallas_src>

<mosaic_0001>
module attributes {stable_mosaic.version = 11 : i64} {
  func.func @encoder_layer_kernel(%arg0: memref<16x32xf32, #tpu.memory_space<vmem>>, %arg1: memref<4x32x32xf32, #tpu.memory_space<vmem>>, %arg2: memref<32x64xf32, #tpu.memory_space<vmem>>, %arg3: memref<64x32xf32, #tpu.memory_space<vmem>>, %arg4: memref<9x1x32xf32, #tpu.memory_space<vmem>>, %arg5: memref<1x64xf32, #tpu.memory_space<vmem>>, %arg6: memref<3x64x64xf32, #tpu.memory_space<vmem>>, %arg7: memref<16x32xf32, #tpu.memory_space<vmem>>) attributes {dimension_semantics = [], scalar_prefetch = 0 : i64, scratch_operands = 0 : i64, tpu.core_type = #tpu.core_type<tc>} {
    %c0 = arith.constant 0 : index
    %c0_0 = arith.constant 0 : index
    %0 = vector.load %arg0[%c0, %c0_0] : memref<16x32xf32, #tpu.memory_space<vmem>>, vector<16x32xf32>
    %c0_1 = arith.constant 0 : index
    %c0_2 = arith.constant 0 : index
    %c0_3 = arith.constant 0 : index
    %1 = vector.load %arg4[%c0_1, %c0_2, %c0_3] : memref<9x1x32xf32, #tpu.memory_space<vmem>>, vector<1x1x32xf32>
    %2 = vector.shape_cast %1 : vector<1x1x32xf32> to vector<1x32xf32>
    %c1 = arith.constant 1 : index
    %c0_4 = arith.constant 0 : index
    %c0_5 = arith.constant 0 : index
    %3 = vector.load %arg4[%c1, %c0_4, %c0_5] : memref<9x1x32xf32, #tpu.memory_space<vmem>>, vector<1x1x32xf32>
    %4 = vector.shape_cast %3 : vector<1x1x32xf32> to vector<1x32xf32>
    %c2 = arith.constant 2 : index
    %c0_6 = arith.constant 0 : index
    %c0_7 = arith.constant 0 : index
    %5 = vector.load %arg4[%c2, %c0_6, %c0_7] : memref<9x1x32xf32, #tpu.memory_space<vmem>>, vector<1x1x32xf32>
    %6 = vector.shape_cast %5 : vector<1x1x32xf32> to vector<1x32xf32>
    %c3 = arith.constant 3 : index
    %c0_8 = arith.constant 0 : index
    %c0_9 = arith.constant 0 : index
    %7 = vector.load %arg4[%c3, %c0_8, %c0_9] : memref<9x1x32xf32, #tpu.memory_space<vmem>>, vector<1x1x32xf32>
    %8 = vector.shape_cast %7 : vector<1x1x32xf32> to vector<1x32xf32>
    %c4 = arith.constant 4 : index
    %c0_10 = arith.constant 0 : index
    %c0_11 = arith.constant 0 : index
    %9 = vector.load %arg4[%c4, %c0_10, %c0_11] : memref<9x1x32xf32, #tpu.memory_space<vmem>>, vector<1x1x32xf32>
    %10 = vector.shape_cast %9 : vector<1x1x32xf32> to vector<1x32xf32>
    %c5 = arith.constant 5 : index
    %c0_12 = arith.constant 0 : index
    %c0_13 = arith.constant 0 : index
    %11 = vector.load %arg4[%c5, %c0_12, %c0_13] : memref<9x1x32xf32, #tpu.memory_space<vmem>>, vector<1x1x32xf32>
    %12 = vector.shape_cast %11 : vector<1x1x32xf32> to vector<1x32xf32>
    %c6 = arith.constant 6 : index
    %c0_14 = arith.constant 0 : index
    %c0_15 = arith.constant 0 : index
    %13 = vector.load %arg4[%c6, %c0_14, %c0_15] : memref<9x1x32xf32, #tpu.memory_space<vmem>>, vector<1x1x32xf32>
    %14 = vector.shape_cast %13 : vector<1x1x32xf32> to vector<1x32xf32>
    %c7 = arith.constant 7 : index
    %c0_16 = arith.constant 0 : index
    %c0_17 = arith.constant 0 : index
    %15 = vector.load %arg4[%c7, %c0_16, %c0_17] : memref<9x1x32xf32, #tpu.memory_space<vmem>>, vector<1x1x32xf32>
    %16 = vector.shape_cast %15 : vector<1x1x32xf32> to vector<1x32xf32>
    %c8 = arith.constant 8 : index
    %c0_18 = arith.constant 0 : index
    %c0_19 = arith.constant 0 : index
    %17 = vector.load %arg4[%c8, %c0_18, %c0_19] : memref<9x1x32xf32, #tpu.memory_space<vmem>>, vector<1x1x32xf32>
    %18 = vector.shape_cast %17 : vector<1x1x32xf32> to vector<1x32xf32>
    %c0_20 = arith.constant 0 : index
    %c0_21 = arith.constant 0 : index
    %19 = vector.load %arg5[%c0_20, %c0_21] : memref<1x64xf32, #tpu.memory_space<vmem>>, vector<1x64xf32>
    %c0_22 = arith.constant 0 : index
    %c0_23 = arith.constant 0 : index
    %c0_24 = arith.constant 0 : index
    %20 = vector.load %arg6[%c0_22, %c0_23, %c0_24] : memref<3x64x64xf32, #tpu.memory_space<vmem>>, vector<1x64x32xf32>
    %21 = vector.shape_cast %20 : vector<1x64x32xf32> to vector<64x32xf32>
    %c1_25 = arith.constant 1 : index
    %c0_26 = arith.constant 0 : index
    %c0_27 = arith.constant 0 : index
    %22 = vector.load %arg6[%c1_25, %c0_26, %c0_27] : memref<3x64x64xf32, #tpu.memory_space<vmem>>, vector<1x64x64xf32>
    %23 = vector.shape_cast %22 : vector<1x64x64xf32> to vector<64x64xf32>
    %c2_28 = arith.constant 2 : index
    %c0_29 = arith.constant 0 : index
    %c0_30 = arith.constant 0 : index
    %24 = vector.load %arg6[%c2_28, %c0_29, %c0_30] : memref<3x64x64xf32, #tpu.memory_space<vmem>>, vector<1x16x64xf32>
    %25 = vector.shape_cast %24 : vector<1x16x64xf32> to vector<16x64xf32>
    %c0_31 = arith.constant 0 : index
    %c0_32 = arith.constant 0 : index
    %c0_33 = arith.constant 0 : index
    %26 = vector.load %arg1[%c0_31, %c0_32, %c0_33] : memref<4x32x32xf32, #tpu.memory_space<vmem>>, vector<1x32x32xf32>
    %27 = vector.shape_cast %26 : vector<1x32x32xf32> to vector<32x32xf32>
    %cst = arith.constant dense<0.000000e+00> : vector<16x32xf32>
    %28 = tpu.matmul %0, %27, %cst {dimension_numbers = #tpu.dot_dimension_numbers<[1], [0], [0], [1], [0, 0, 1, 1], [], []>} : vector<16x32xf32>, vector<32x32xf32>, vector<16x32xf32> -> vector<16x32xf32>
    %29 = vector.broadcast %2 : vector<1x32xf32> to vector<16x32xf32>
    %30 = arith.addf %28, %29 : vector<16x32xf32>
    %c1_34 = arith.constant 1 : index
    %c0_35 = arith.constant 0 : index
    %c0_36 = arith.constant 0 : index
    %31 = vector.load %arg1[%c1_34, %c0_35, %c0_36] : memref<4x32x32xf32, #tpu.memory_space<vmem>>, vector<1x32x32xf32>
    %32 = vector.shape_cast %31 : vector<1x32x32xf32> to vector<32x32xf32>
    %cst_37 = arith.constant dense<0.000000e+00> : vector<16x32xf32>
    %33 = tpu.matmul %0, %32, %cst_37 {dimension_numbers = #tpu.dot_dimension_numbers<[1], [0], [0], [1], [0, 0, 1, 1], [], []>} : vector<16x32xf32>, vector<32x32xf32>, vector<16x32xf32> -> vector<16x32xf32>
    %34 = vector.broadcast %4 : vector<1x32xf32> to vector<16x32xf32>
    %35 = arith.addf %33, %34 : vector<16x32xf32>
    %c2_38 = arith.constant 2 : index
    %c0_39 = arith.constant 0 : index
    %c0_40 = arith.constant 0 : index
    %36 = vector.load %arg1[%c2_38, %c0_39, %c0_40] : memref<4x32x32xf32, #tpu.memory_space<vmem>>, vector<1x32x32xf32>
    %37 = vector.shape_cast %36 : vector<1x32x32xf32> to vector<32x32xf32>
    %cst_41 = arith.constant dense<0.000000e+00> : vector<16x32xf32>
    %38 = tpu.matmul %0, %37, %cst_41 {dimension_numbers = #tpu.dot_dimension_numbers<[1], [0], [0], [1], [0, 0, 1, 1], [], []>} : vector<16x32xf32>, vector<32x32xf32>, vector<16x32xf32> -> vector<16x32xf32>
    %39 = vector.broadcast %6 : vector<1x32xf32> to vector<16x32xf32>
    %40 = arith.addf %38, %39 : vector<16x32xf32>
    %41 = tpu.concatenate %35, %35, %35, %35 in 0 : vector<16x32xf32>, vector<16x32xf32>, vector<16x32xf32>, vector<16x32xf32> -> vector<64x32xf32>
    %42 = arith.mulf %41, %21 : vector<64x32xf32>
    %43 = tpu.concatenate %40, %40, %40, %40 in 0 : vector<16x32xf32>, vector<16x32xf32>, vector<16x32xf32>, vector<16x32xf32> -> vector<64x32xf32>
    %44 = arith.mulf %43, %21 : vector<64x32xf32>
    "tpu.trace_start"() <{level = 10 : i32, message = "qd,kd->qk"}> : () -> ()
    %cst_42 = arith.constant dense<0.000000e+00> : vector<16x64xf32>
    %45 = tpu.matmul %30, %42, %cst_42 {dimension_numbers = #tpu.dot_dimension_numbers<[1], [1], [0], [0], [0, 0, 1, 0], [], []>} : vector<16x32xf32>, vector<64x32xf32>, vector<16x64xf32> -> vector<16x64xf32>
    "tpu.trace_stop"() : () -> ()
    %46 = arith.addf %45, %25 : vector<16x64xf32>
    %cst_43 = arith.constant dense<0xFF800000> : vector<16xf32>
    %47 = vector.multi_reduction <maximumf>, %46, %cst_43 [1] : vector<16x64xf32> to vector<16xf32>
    %48 = vector.shape_cast %47 : vector<16xf32> to vector<16x1xf32>
    %49 = vector.broadcast %48 : vector<16x1xf32> to vector<16x64xf32>
    %50 = arith.subf %46, %49 : vector<16x64xf32>
    %51 = math.exp %50 : vector<16x64xf32>
    %cst_44 = arith.constant dense<0.000000e+00> : vector<16x64xf32>
    %52 = tpu.matmul %51, %23, %cst_44 {dimension_numbers = #tpu.dot_dimension_numbers<[1], [0], [0], [1], [0, 0, 1, 1], [], []>} : vector<16x64xf32>, vector<64x64xf32>, vector<16x64xf32> -> vector<16x64xf32>
    %53 = tpu.reciprocal %52 : vector<16x64xf32> -> vector<16x64xf32>
    %54 = arith.mulf %51, %53 : vector<16x64xf32>
    %cst_45 = arith.constant dense<0.000000e+00> : vector<16x32xf32>
    %55 = tpu.matmul %54, %44, %cst_45 {dimension_numbers = #tpu.dot_dimension_numbers<[1], [0], [0], [1], [0, 0, 1, 1], [], []>} : vector<16x64xf32>, vector<64x32xf32>, vector<16x32xf32> -> vector<16x32xf32>
    %c3_46 = arith.constant 3 : index
    %c0_47 = arith.constant 0 : index
    %c0_48 = arith.constant 0 : index
    %56 = vector.load %arg1[%c3_46, %c0_47, %c0_48] : memref<4x32x32xf32, #tpu.memory_space<vmem>>, vector<1x32x32xf32>
    %57 = vector.shape_cast %56 : vector<1x32x32xf32> to vector<32x32xf32>
    %cst_49 = arith.constant dense<0.000000e+00> : vector<16x32xf32>
    %58 = tpu.matmul %55, %57, %cst_49 {dimension_numbers = #tpu.dot_dimension_numbers<[1], [0], [0], [1], [0, 0, 1, 1], [], []>} : vector<16x32xf32>, vector<32x32xf32>, vector<16x32xf32> -> vector<16x32xf32>
    %59 = vector.broadcast %8 : vector<1x32xf32> to vector<16x32xf32>
    %60 = arith.addf %58, %59 : vector<16x32xf32>
    %61 = arith.addf %0, %60 : vector<16x32xf32>
    %cst_50 = arith.constant dense<0.000000e+00> : vector<16xf32>
    %62 = vector.multi_reduction <add>, %61, %cst_50 [1] : vector<16x32xf32> to vector<16xf32>
    %63 = vector.shape_cast %62 : vector<16xf32> to vector<16x1xf32>
    %cst_51 = arith.constant 3.200000e+01 : f32
    %64 = vector.broadcast %cst_51 : f32 to vector<16x1xf32>
    %65 = arith.divf %63, %64 : vector<16x1xf32>
    %66 = vector.broadcast %65 : vector<16x1xf32> to vector<16x32xf32>
    %67 = arith.subf %61, %66 : vector<16x32xf32>
    %68 = arith.mulf %67, %67 : vector<16x32xf32>
    %cst_52 = arith.constant dense<0.000000e+00> : vector<16xf32>
    %69 = vector.multi_reduction <add>, %68, %cst_52 [1] : vector<16x32xf32> to vector<16xf32>
    %70 = vector.shape_cast %69 : vector<16xf32> to vector<16x1xf32>
    %cst_53 = arith.constant 3.200000e+01 : f32
    %71 = vector.broadcast %cst_53 : f32 to vector<16x1xf32>
    %72 = arith.divf %70, %71 : vector<16x1xf32>
    %73 = vector.broadcast %65 : vector<16x1xf32> to vector<16x32xf32>
    %74 = arith.subf %61, %73 : vector<16x32xf32>
    %cst_54 = arith.constant 9.99999974E-6 : f32
    %75 = vector.broadcast %cst_54 : f32 to vector<16x1xf32>
    %76 = arith.addf %72, %75 : vector<16x1xf32>
    %77 = math.rsqrt %76 : vector<16x1xf32>
    %78 = vector.broadcast %77 : vector<16x1xf32> to vector<16x32xf32>
    %79 = arith.mulf %74, %78 : vector<16x32xf32>
    %80 = vector.broadcast %12 : vector<1x32xf32> to vector<16x32xf32>
    %81 = arith.mulf %79, %80 : vector<16x32xf32>
    %82 = vector.broadcast %14 : vector<1x32xf32> to vector<16x32xf32>
    %83 = arith.addf %81, %82 : vector<16x32xf32>
    %c0_55 = arith.constant 0 : index
    %c0_56 = arith.constant 0 : index
    %84 = vector.load %arg2[%c0_55, %c0_56] : memref<32x64xf32, #tpu.memory_space<vmem>>, vector<32x64xf32>
    %cst_57 = arith.constant dense<0.000000e+00> : vector<16x64xf32>
    %85 = tpu.matmul %83, %84, %cst_57 {dimension_numbers = #tpu.dot_dimension_numbers<[1], [0], [0], [1], [0, 0, 1, 1], [], []>} : vector<16x32xf32>, vector<32x64xf32>, vector<16x64xf32> -> vector<16x64xf32>
    %86 = vector.broadcast %19 : vector<1x64xf32> to vector<16x64xf32>
    %87 = arith.addf %85, %86 : vector<16x64xf32>
    %cst_58 = arith.constant 0.000000e+00 : f32
    %88 = vector.broadcast %cst_58 : f32 to vector<16x64xf32>
    %89 = arith.maximumf %87, %88 : vector<16x64xf32>
    %c0_59 = arith.constant 0 : index
    %c0_60 = arith.constant 0 : index
    %90 = vector.load %arg3[%c0_59, %c0_60] : memref<64x32xf32, #tpu.memory_space<vmem>>, vector<64x32xf32>
    %cst_61 = arith.constant dense<0.000000e+00> : vector<16x32xf32>
    %91 = tpu.matmul %89, %90, %cst_61 {dimension_numbers = #tpu.dot_dimension_numbers<[1], [0], [0], [1], [0, 0, 1, 1], [], []>} : vector<16x64xf32>, vector<64x32xf32>, vector<16x32xf32> -> vector<16x32xf32>
    %92 = vector.broadcast %10 : vector<1x32xf32> to vector<16x32xf32>
    %93 = arith.addf %91, %92 : vector<16x32xf32>
    %94 = arith.addf %83, %93 : vector<16x32xf32>
    %cst_62 = arith.constant dense<0.000000e+00> : vector<16xf32>
    %95 = vector.multi_reduction <add>, %94, %cst_62 [1] : vector<16x32xf32> to vector<16xf32>
    %96 = vector.shape_cast %95 : vector<16xf32> to vector<16x1xf32>
    %cst_63 = arith.constant 3.200000e+01 : f32
    %97 = vector.broadcast %cst_63 : f32 to vector<16x1xf32>
    %98 = arith.divf %96, %97 : vector<16x1xf32>
    %99 = vector.broadcast %98 : vector<16x1xf32> to vector<16x32xf32>
    %100 = arith.subf %94, %99 : vector<16x32xf32>
    %101 = arith.mulf %100, %100 : vector<16x32xf32>
    %cst_64 = arith.constant dense<0.000000e+00> : vector<16xf32>
    %102 = vector.multi_reduction <add>, %101, %cst_64 [1] : vector<16x32xf32> to vector<16xf32>
    %103 = vector.shape_cast %102 : vector<16xf32> to vector<16x1xf32>
    %cst_65 = arith.constant 3.200000e+01 : f32
    %104 = vector.broadcast %cst_65 : f32 to vector<16x1xf32>
    %105 = arith.divf %103, %104 : vector<16x1xf32>
    %106 = vector.broadcast %98 : vector<16x1xf32> to vector<16x32xf32>
    %107 = arith.subf %94, %106 : vector<16x32xf32>
    %cst_66 = arith.constant 9.99999974E-6 : f32
    %108 = vector.broadcast %cst_66 : f32 to vector<16x1xf32>
    %109 = arith.addf %105, %108 : vector<16x1xf32>
    %110 = math.rsqrt %109 : vector<16x1xf32>
    %111 = vector.broadcast %110 : vector<16x1xf32> to vector<16x32xf32>
    %112 = arith.mulf %107, %111 : vector<16x32xf32>
    %113 = vector.broadcast %16 : vector<1x32xf32> to vector<16x32xf32>
    %114 = arith.mulf %112, %113 : vector<16x32xf32>
    %115 = vector.broadcast %18 : vector<1x32xf32> to vector<16x32xf32>
    %116 = arith.addf %114, %115 : vector<16x32xf32>
    %c0_67 = arith.constant 0 : index
    %c0_68 = arith.constant 0 : index
    %117 = vector.load %arg7[%c0_67, %c0_68] : memref<16x32xf32, #tpu.memory_space<vmem>>, vector<16x32xf32>
    tpu.vector_store %arg7[%c0_67, %c0_68], %116 {strides = array<i32>} : memref<16x32xf32, #tpu.memory_space<vmem>>, vector<16x32xf32>,
    return
  }
}

</mosaic_0001>

<llo_original>
// kernel: transformer_encoder_layer.1
$region0: #{transformer_encoder_layer.1}
  #allocation0 [shape = 'u32[]', space=smem, size = 0x4, offset = 0x4, fixed_abs, tag = 'smem constant byte address 0x4 - core index']
  #allocation1 [shape = 'u32[144,128]{1,0:T(1,128)}', space=vmem, size = 0x12000, scoped, tag = 'internal scratch']
  %s0 = inlined_call_operand.vmem [shape: f32[16,32], index: 0, kind: input, shape index: {}]
  %s1 = inlined_call_operand.vmem [shape: f32[4,32,32], index: 1, kind: input, shape index: {}]
  %s2 = inlined_call_operand.vmem [shape: f32[32,64], index: 2, kind: input, shape index: {}]
  %s3 = inlined_call_operand.vmem [shape: f32[64,32], index: 3, kind: input, shape index: {}]
  %s4 = inlined_call_operand.vmem [shape: f32[9,1,32], index: 4, kind: input, shape index: {}]
  %s5 = inlined_call_operand.vmem [shape: f32[1,64], index: 5, kind: input, shape index: {}]
  %s6 = inlined_call_operand.vmem [shape: f32[3,64,64], index: 6, kind: input, shape index: {}]
  %s7 = inlined_call_operand.hbm [shape: f32[16,32], index: 7, kind: output, shape index: {}]
  %s8 = sld [smem:[#allocation0]]
  $region38: #{transformer_encoder_layer.1} parent=0
    _
  %s10 = ssub.s32 1, %s8
  %s11 = scalar_select 0, %s10, %s8
  $region1: #{transformer_encoder_layer.1} parent=0
    #allocation2 [shape = 'u8[8192]{0}', space=vmem, size = 0x2000, scoped, tag = 'output window, operand 0, single buffered']
    #allocation3 [shape = 's32[1]{0}', space=sflag, size = 0x4, scoped, tag = 'scoped memory for transformer_encoder_layer.1']
    %12 = vsyncpa [#allocation3], 0
    // Predicated region
    $region2: #{transformer_encoder_layer.1} parent=1 // pred_check
      _
    $region3: #{transformer_encoder_layer.1} parent=1 // pred_check_branch
      %14 = sbr.rel (0) target = $region5
    $region4: #{transformer_encoder_layer.1} parent=1 // pred_region
      _
    $region5: #{transformer_encoder_layer.1} parent=1 // pred_fallthru
      _
    // Predicated region
    $region6: #{transformer_encoder_layer.1} parent=1 // pred_check
      _
    $region7: #{transformer_encoder_layer.1} parent=1 // pred_check_branch
      %16 = sbr.rel (0) target = $region9
    $region8: #{transformer_encoder_layer.1} parent=1 // pred_region
      _
    $region9: #{transformer_encoder_layer.1} parent=1 // pred_fallthru
      _
    // Predicated region
    $region10: #{transformer_encoder_layer.1} parent=1 // pred_check
      _
    $region11: #{transformer_encoder_layer.1} parent=1 // pred_check_branch
      %18 = sbr.rel (0) target = $region13
    $region12: #{transformer_encoder_layer.1} parent=1 // pred_region
      _
    $region13: #{transformer_encoder_layer.1} parent=1 // pred_fallthru
      _
    // Predicated region
    $region14: #{transformer_encoder_layer.1} parent=1 // pred_check
      _
    $region15: #{transformer_encoder_layer.1} parent=1 // pred_check_branch
      %20 = sbr.rel (0) target = $region17
    $region16: #{transformer_encoder_layer.1} parent=1 // pred_region
      _
    $region17: #{transformer_encoder_layer.1} parent=1 // pred_fallthru
      _
    // Predicated region
    $region18: #{transformer_encoder_layer.1} parent=1 // pred_check
      _
    $region19: #{transformer_encoder_layer.1} parent=1 // pred_check_branch
      %22 = sbr.rel (0) target = $region21
    $region20: #{transformer_encoder_layer.1} parent=1 // pred_region
      _
    $region21: #{transformer_encoder_layer.1} parent=1 // pred_fallthru
      _
    // Predicated region
    $region22: #{transformer_encoder_layer.1} parent=1 // pred_check
      _
    $region23: #{transformer_encoder_layer.1} parent=1 // pred_check_branch
      %24 = sbr.rel (0) target = $region25
    $region24: #{transformer_encoder_layer.1} parent=1 // pred_region
      _
    $region25: #{transformer_encoder_layer.1} parent=1 // pred_fallthru
      _
    // Predicated region
    $region26: #{transformer_encoder_layer.1} parent=1 // pred_check
      _
    $region27: #{transformer_encoder_layer.1} parent=1 // pred_check_branch
      %26 = sbr.rel (0) target = $region29
    $region28: #{transformer_encoder_layer.1} parent=1 // pred_region
      _
    $region29: #{transformer_encoder_layer.1} parent=1 // pred_fallthru
      _
    %v27 = vld [vmem:[%s0] sm:$0xff]
    %v28 = vld [vmem:[%s0 + $0x8] sm:$0xff]
    %v29 = vld [vmem:[%s4] sm:$0x1]
    %s30 = scalar_lea.vmem %s4, 1
    %v31 = vld [vmem:[%s30] sm:$0x1]
    %s32 = scalar_lea.vmem %s4, 2
    %v33 = vld [vmem:[%s32] sm:$0x1]
    %s34 = scalar_lea.vmem %s4, 3
    %v35 = vld [vmem:[%s34] sm:$0x1]
    %s36 = scalar_lea.vmem %s4, 4
    %v37 = vld [vmem:[%s36] sm:$0x1]
    %s38 = scalar_lea.vmem %s4, 5
    %v39 = vld [vmem:[%s38] sm:$0x1]
    %s40 = scalar_lea.vmem %s4, 6
    %v41 = vld [vmem:[%s40] sm:$0x1]
    %s42 = scalar_lea.vmem %s4, 7
    %v43 = vld [vmem:[%s42] sm:$0x1]
    %s44 = scalar_lea.vmem %s4, 8
    %v45 = vld [vmem:[%s44] sm:$0x1]
    %v46 = vld [vmem:[%s5] sm:$0x1]
    %v47 = vld [vmem:[%s6] sm:$0xff]
    %v48 = vld [vmem:[%s6 + $0x8] sm:$0xff]
    %v49 = vld [vmem:[%s6 + $0x10] sm:$0xff]
    %v50 = vld [vmem:[%s6 + $0x18] sm:$0xff]
    %v51 = vld [vmem:[%s6 + $0x20] sm:$0xff]
    %v52 = vld [vmem:[%s6 + $0x28] sm:$0xff]
    %v53 = vld [vmem:[%s6 + $0x30] sm:$0xff]
    %v54 = vld [vmem:[%s6 + $0x38] sm:$0xff]
    %s55 = scalar_lea.vmem %s6, 64
    %v56 = vld [vmem:[%s55] sm:$0xff]
    %v57 = vld [vmem:[%s55 + $0x8] sm:$0xff]
    %v58 = vld [vmem:[%s55 + $0x10] sm:$0xff]
    %v59 = vld [vmem:[%s55 + $0x18] sm:$0xff]
    %v60 = vld [vmem:[%s55 + $0x20] sm:$0xff]
    %v61 = vld [vmem:[%s55 + $0x28] sm:$0xff]
    %v62 = vld [vmem:[%s55 + $0x30] sm:$0xff]
    %v63 = vld [vmem:[%s55 + $0x38] sm:$0xff]
    %s64 = scalar_lea.vmem %s6, 128
    %v65 = vld [vmem:[%s64] sm:$0xff]
    %v66 = vld [vmem:[%s64 + $0x8] sm:$0xff]
    %v67 = vld [vmem:[%s1] sm:$0xff]
    %v68 = vld [vmem:[%s1 + $0x8] sm:$0xff]
    %v69 = vld [vmem:[%s1 + $0x10] sm:$0xff]
    %v70 = vld [vmem:[%s1 + $0x18] sm:$0xff]
    %v72 = vlaneseq
    %v73 = vshrl.u32 %v72, 7
    %v74 = vsub.s32 0, %v73
    %v75 = vrot.slane %v29, %v74
    %vm77 = vcmask 261120
    %v79 = vsel %vm77, %v27, 0
    %v82 = vsel %vm77, %v28, 0
    %84 = vmatprep.subr.mxu0 0.0
    %85 = vmatpush1.msra.mxu0 %v67
    %86 = vmatprep.subr.mxu0 0.0
    %87 = vmatpush1.msra.mxu0 %v68
    %88 = vmatprep.subr.mxu0 0.0
    %89 = vmatpush1.msra.mxu0 %v69
    %90 = vmatprep.subr.mxu0 0.0
    %91 = vmatpush1.msra.mxu0 %v70
    %92 = vmatprep.subr.mxu0 0.0
    %93 = vmatpush1.msra.mxu0 0.0
    %94 = vmatprep.subr.mxu0 0.0
    %95 = vmatpush1.msra.mxu0 0.0
    %96 = vmatprep.subr.mxu0 0.0
    %97 = vmatpush1.msra.mxu0 0.0
    %98 = vmatprep.subr.mxu0 0.0
    %99 = vmatpush1.msra.mxu0 0.0
    %100 = vmatprep.subr.mxu0 0.0
    %101 = vmatpush1.msra.mxu0 0.0
    %102 = vmatprep.subr.mxu0 0.0
    %103 = vmatpush1.msra.mxu0 0.0
    %104 = vmatprep.subr.mxu0 0.0
    %105 = vmatpush1.msra.mxu0 0.0
    %106 = vmatprep.subr.mxu0 0.0
    %107 = vmatpush1.msra.mxu0 0.0
    %108 = vmatprep.subr.mxu0 0.0
    %109 = vmatpush1.msra.mxu0 0.0
    %110 = vmatprep.subr.mxu0 0.0
    %111 = vmatpush1.msra.mxu0 0.0
    %112 = vmatprep.subr.mxu0 0.0
    %113 = vmatpush1.msra.mxu0 0.0
    %114 = vmatprep.subr.mxu0 0.0
    %115 = vmatpush1.msra.mxu0 0.0
    %116 = vmatprep.subr.mxu0 0.0
    %117 = vmatpush1.msra.mxu0 0.0
    %118 = vmatprep.subr.mxu0 0.0
    %119 = vmatpush1.msra.mxu0 0.0
    %120 = vmatprep.subr.mxu0 0.0
    %121 = vmatpush1.msra.mxu0 0.0
    %122 = vmatprep.subr.mxu0 0.0
    %123 = vmatpush1.msra.mxu0 0.0
    %124 = vmatprep.subr.mxu0 0.0
    %125 = vmatpush1.msra.mxu0 0.0
    %126 = vmatprep.subr.mxu0 0.0
    %127 = vmatpush1.msra.mxu0 0.0
    %128 = vmatprep.subr.mxu0 0.0
    %129 = vmatpush1.msra.mxu0 0.0
    %130 = vmatprep.subr.mxu0 0.0
    %131 = vmatpush1.msra.mxu0 0.0
    %132 = vmatprep.subr.mxu0 0.0
    %133 = vmatpush1.msra.mxu0 0.0
    %134 = vmatprep.subr.mxu0 0.0
    %135 = vmatpush1.msra.mxu0 0.0
    %136 = vmatprep.subr.mxu0 0.0
    %137 = vmatpush1.msra.mxu0 0.0
    %138 = vmatprep.subr.mxu0 0.0
    %139 = vmatpush1.msra.mxu0 0.0
    %140 = vmatprep.subr.mxu0 0.0
    %141 = vmatpush1.msra.mxu0 0.0
    %142 = vmatprep.subr.mxu0 0.0
    %143 = vmatpush1.msra.mxu0 0.0
    %144 = vmatprep.subr.mxu0 0.0
    %145 = vmatpush1.msra.mxu0 0.0
    %146 = vmatprep.subr.mxu0 0.0
    %147 = vmatpush1.msra.mxu0 0.0
    %148 = vmatprep.mubr.f32.mxu0 0.0
    %149 = vmatmul.mubr.f32.gmra.mrb[0].mxu0 %v79
    %v150 = vpop.f32.mrb[0].mxu0
    %v151 = vadd.f32 %v75, %v150
    %v152 = vpop.f32.mrb[0].mxu0
    %153 = vmatprep.mubr.f32.mxu0 0.0
    %154 = vmatmul.mubr.f32.gmra.mrb[0].mxu0 %v82
    %v155 = vpop.f32.mrb[0].mxu0
    %v156 = vadd.f32 %v75, %v155
    %v157 = vpop.f32.mrb[0].mxu0
    %158 = vdwg.mxu0
    %s159 = scalar_lea.vmem %s1, 32
    %v160 = vld [vmem:[%s159] sm:$0xff]
    %v161 = vld [vmem:[%s159 + $0x8] sm:$0xff]
    %v162 = vld [vmem:[%s159 + $0x10] sm:$0xff]
    %v163 = vld [vmem:[%s159 + $0x18] sm:$0xff]
    %v165 = vlaneseq
    %v166 = vshrl.u32 %v165, 7
    %v167 = vsub.s32 0, %v166
    %v168 = vrot.slane %v31, %v167
    %170 = vmatprep.subr.mxu0 0.0
    %171 = vmatpush1.msra.mxu0 %v160
    %172 = vmatprep.subr.mxu0 0.0
    %173 = vmatpush1.msra.mxu0 %v161
    %174 = vmatprep.subr.mxu0 0.0
    %175 = vmatpush1.msra.mxu0 %v162
    %176 = vmatprep.subr.mxu0 0.0
    %177 = vmatpush1.msra.mxu0 %v163
    %178 = vmatprep.subr.mxu0 0.0
    %179 = vmatpush1.msra.mxu0 0.0
    %180 = vmatprep.subr.mxu0 0.0
    %181 = vmatpush1.msra.mxu0 0.0
    %182 = vmatprep.subr.mxu0 0.0
    %183 = vmatpush1.msra.mxu0 0.0
    %184 = vmatprep.subr.mxu0 0.0
    %185 = vmatpush1.msra.mxu0 0.0
    %186 = vmatprep.subr.mxu0 0.0
    %187 = vmatpush1.msra.mxu0 0.0
    %188 = vmatprep.subr.mxu0 0.0
    %189 = vmatpush1.msra.mxu0 0.0
    %190 = vmatprep.subr.mxu0 0.0
    %191 = vmatpush1.msra.mxu0 0.0
    %192 = vmatprep.subr.mxu0 0.0
    %193 = vmatpush1.msra.mxu0 0.0
    %194 = vmatprep.subr.mxu0 0.0
    %195 = vmatpush1.msra.mxu0 0.0
    %196 = vmatprep.subr.mxu0 0.0
    %197 = vmatpush1.msra.mxu0 0.0
    %198 = vmatprep.subr.mxu0 0.0
    %199 = vmatpush1.msra.mxu0 0.0
    %200 = vmatprep.subr.mxu0 0.0
    %201 = vmatpush1.msra.mxu0 0.0
    %202 = vmatprep.subr.mxu0 0.0
    %203 = vmatpush1.msra.mxu0 0.0
    %204 = vmatprep.subr.mxu0 0.0
    %205 = vmatpush1.msra.mxu0 0.0
    %206 = vmatprep.subr.mxu0 0.0
    %207 = vmatpush1.msra.mxu0 0.0
    %208 = vmatprep.subr.mxu0 0.0
    %209 = vmatpush1.msra.mxu0 0.0
    %210 = vmatprep.subr.mxu0 0.0
    %211 = vmatpush1.msra.mxu0 0.0
    %212 = vmatprep.subr.mxu0 0.0
    %213 = vmatpush1.msra.mxu0 0.0
    %214 = vmatprep.subr.mxu0 0.0
    %215 = vmatpush1.msra.mxu0 0.0
    %216 = vmatprep.subr.mxu0 0.0
    %217 = vmatpush1.msra.mxu0 0.0
    %218 = vmatprep.subr.mxu0 0.0
    %219 = vmatpush1.msra.mxu0 0.0
    %220 = vmatprep.subr.mxu0 0.0
    %221 = vmatpush1.msra.mxu0 0.0
    %222 = vmatprep.subr.mxu0 0.0
    %223 = vmatpush1.msra.mxu0 0.0
    %224 = vmatprep.subr.mxu0 0.0
    %225 = vmatpush1.msra.mxu0 0.0
    %226 = vmatprep.subr.mxu0 0.0
    %227 = vmatpush1.msra.mxu0 0.0
    %228 = vmatprep.subr.mxu0 0.0
    %229 = vmatpush1.msra.mxu0 0.0
    %230 = vmatprep.subr.mxu0 0.0
    %231 = vmatpush1.msra.mxu0 0.0
    %232 = vmatprep.subr.mxu0 0.0
    %233 = vmatpush1.msra.mxu0 0.0
    %234 = vmatprep.mubr.f32.mxu0 0.0
    %235 = vmatmul.mubr.f32.gmra.mrb[0].mxu0 %v79
    %v236 = vpop.f32.mrb[0].mxu0
    %v237 = vadd.f32 %v168, %v236
    %v238 = vpop.f32.mrb[0].mxu0
    %239 = vmatprep.mubr.f32.mxu0 0.0
    %240 = vmatmul.mubr.f32.gmra.mrb[0].mxu0 %v82
    %v241 = vpop.f32.mrb[0].mxu0
    %v242 = vadd.f32 %v168, %v241
    %v243 = vpop.f32.mrb[0].mxu0
    %244 = vdwg.mxu0
    %s245 = scalar_lea.vmem %s1, 64
    %v246 = vld [vmem:[%s245] sm:$0xff]
    %v247 = vld [vmem:[%s245 + $0x8] sm:$0xff]
    %v248 = vld [vmem:[%s245 + $0x10] sm:$0xff]
    %v249 = vld [vmem:[%s245 + $0x18] sm:$0xff]
    %v251 = vlaneseq
    %v252 = vshrl.u32 %v251, 7
    %v253 = vsub.s32 0, %v252
    %v254 = vrot.slane %v33, %v253
    %256 = vmatprep.subr.mxu0 0.0
    %257 = vmatpush1.msra.mxu0 %v246
    %258 = vmatprep.subr.mxu0 0.0
    %259 = vmatpush1.msra.mxu0 %v247
    %260 = vmatprep.subr.mxu0 0.0
    %261 = vmatpush1.msra.mxu0 %v248
    %262 = vmatprep.subr.mxu0 0.0
    %263 = vmatpush1.msra.mxu0 %v249
    %264 = vmatprep.subr.mxu0 0.0
    %265 = vmatpush1.msra.mxu0 0.0
    %266 = vmatprep.subr.mxu0 0.0
    %267 = vmatpush1.msra.mxu0 0.0
    %268 = vmatprep.subr.mxu0 0.0
    %269 = vmatpush1.msra.mxu0 0.0
    %270 = vmatprep.subr.mxu0 0.0
    %271 = vmatpush1.msra.mxu0 0.0
    %272 = vmatprep.subr.mxu0 0.0
    %273 = vmatpush1.msra.mxu0 0.0
    %274 = vmatprep.subr.mxu0 0.0
    %275 = vmatpush1.msra.mxu0 0.0
    %276 = vmatprep.subr.mxu0 0.0
    %277 = vmatpush1.msra.mxu0 0.0
    %278 = vmatprep.subr.mxu0 0.0
    %279 = vmatpush1.msra.mxu0 0.0
    %280 = vmatprep.subr.mxu0 0.0
    %281 = vmatpush1.msra.mxu0 0.0
    %282 = vmatprep.subr.mxu0 0.0
    %283 = vmatpush1.msra.mxu0 0.0
    %284 = vmatprep.subr.mxu0 0.0
    %285 = vmatpush1.msra.mxu0 0.0
    %286 = vmatprep.subr.mxu0 0.0
    %287 = vmatpush1.msra.mxu0 0.0
    %288 = vmatprep.subr.mxu0 0.0
    %289 = vmatpush1.msra.mxu0 0.0
    %290 = vmatprep.subr.mxu0 0.0
    %291 = vmatpush1.msra.mxu0 0.0
    %292 = vmatprep.subr.mxu0 0.0
    %293 = vmatpush1.msra.mxu0 0.0
    %294 = vmatprep.subr.mxu0 0.0
    %295 = vmatpush1.msra.mxu0 0.0
    %296 = vmatprep.subr.mxu0 0.0
    %297 = vmatpush1.msra.mxu0 0.0
    %298 = vmatprep.subr.mxu0 0.0
    %299 = vmatpush1.msra.mxu0 0.0
    %300 = vmatprep.subr.mxu0 0.0
    %301 = vmatpush1.msra.mxu0 0.0
    %302 = vmatprep.subr.mxu0 0.0
    %303 = vmatpush1.msra.mxu0 0.0
    %304 = vmatprep.subr.mxu0 0.0
    %305 = vmatpush1.msra.mxu0 0.0
    %306 = vmatprep.subr.mxu0 0.0
    %307 = vmatpush1.msra.mxu0 0.0
    %308 = vmatprep.subr.mxu0 0.0
    %309 = vmatpush1.msra.mxu0 0.0
    %310 = vmatprep.subr.mxu0 0.0
    %311 = vmatpush1.msra.mxu0 0.0
    %312 = vmatprep.subr.mxu0 0.0
    %313 = vmatpush1.msra.mxu0 0.0
    %314 = vmatprep.subr.mxu0 0.0
    %315 = vmatpush1.msra.mxu0 0.0
    %316 = vmatprep.subr.mxu0 0.0
    %317 = vmatpush1.msra.mxu0 0.0
    %318 = vmatprep.subr.mxu0 0.0
    %319 = vmatpush1.msra.mxu0 0.0
    %320 = vmatprep.mubr.f32.mxu0 0.0
    %321 = vmatmul.mubr.f32.gmra.mrb[0].mxu0 %v79
    %v322 = vpop.f32.mrb[0].mxu0
    %v323 = vadd.f32 %v254, %v322
    %v324 = vpop.f32.mrb[0].mxu0
    %325 = vmatprep.mubr.f32.mxu0 0.0
    %326 = vmatmul.mubr.f32.gmra.mrb[0].mxu0 %v82
    %v327 = vpop.f32.mrb[0].mxu0
    %v328 = vadd.f32 %v254, %v327
    %v329 = vpop.f32.mrb[0].mxu0
    %330 = vdwg.mxu0
    %v331 = vmul.f32 %v237, %v47
    %v332 = vmul.f32 %v242, %v48
    %v333 = vmul.f32 %v237, %v49
    %v334 = vmul.f32 %v242, %v50
    %v335 = vmul.f32 %v237, %v51
    %v336 = vmul.f32 %v242, %v52
    %v337 = vmul.f32 %v237, %v53
    %v338 = vmul.f32 %v242, %v54
    %v339 = vmul.f32 %v323, %v47
    %v340 = vmul.f32 %v328, %v48
    %v341 = vmul.f32 %v323, %v49
    %v342 = vmul.f32 %v328, %v50
    %v343 = vmul.f32 %v323, %v51
    %v344 = vmul.f32 %v328, %v52
    %v345 = vmul.f32 %v323, %v53
    %v346 = vmul.f32 %v328, %v54
    %v348 = vsel %vm77, %v151, 0
    %v351 = vsel %vm77, %v156, 0
    %v354 = vsel %vm77, %v331, 0
    %v357 = vsel %vm77, %v332, 0
    %v360 = vsel %vm77, %v333, 0
    %v363 = vsel %vm77, %v334, 0
    %v366 = vsel %vm77, %v335, 0
    %v369 = vsel %vm77, %v336, 0
    %v372 = vsel %vm77, %v337, 0
    %v375 = vsel %vm77, %v338, 0
    %377 = vmatprep.subr.mxu0 0.0
    %378 = vmatpush1.xpose.msra.mxu0 %v354
    %379 = vmatprep.subr.mxu0 0.0
    %380 = vmatpush1.xpose.msra.mxu0 %v357
    %381 = vmatprep.subr.mxu0 0.0
    %382 = vmatpush1.xpose.msra.mxu0 %v360
    %383 = vmatprep.subr.mxu0 0.0
    %384 = vmatpush1.xpose.msra.mxu0 %v363
    %385 = vmatprep.subr.mxu0 0.0
    %386 = vmatpush1.xpose.msra.mxu0 %v366
    %387 = vmatprep.subr.mxu0 0.0
    %388 = vmatpush1.xpose.msra.mxu0 %v369
    %389 = vmatprep.subr.mxu0 0.0
    %390 = vmatpush1.xpose.msra.mxu0 %v372
    %391 = vmatprep.subr.mxu0 0.0
    %392 = vmatpush1.xpose.msra.mxu0 %v375
    %393 = vmatprep.subr.mxu0 0.0
    %394 = vmatpush1.xpose.msra.mxu0 0.0
    %395 = vmatprep.subr.mxu0 0.0
    %396 = vmatpush1.xpose.msra.mxu0 0.0
    %397 = vmatprep.subr.mxu0 0.0
    %398 = vmatpush1.xpose.msra.mxu0 0.0
    %399 = vmatprep.subr.mxu0 0.0
    %400 = vmatpush1.xpose.msra.mxu0 0.0
    %401 = vmatprep.subr.mxu0 0.0
    %402 = vmatpush1.xpose.msra.mxu0 0.0
    %403 = vmatprep.subr.mxu0 0.0
    %404 = vmatpush1.xpose.msra.mxu0 0.0
    %405 = vmatprep.subr.mxu0 0.0
    %406 = vmatpush1.xpose.msra.mxu0 0.0
    %407 = vmatprep.subr.mxu0 0.0
    %408 = vmatpush1.xpose.msra.mxu0 0.0
    %409 = vmatprep.subr.mxu0 0.0
    %410 = vmatpush1.xpose.msra.mxu0 0.0
    %411 = vmatprep.subr.mxu0 0.0
    %412 = vmatpush1.xpose.msra.mxu0 0.0
    %413 = vmatprep.subr.mxu0 0.0
    %414 = vmatpush1.xpose.msra.mxu0 0.0
    %415 = vmatprep.subr.mxu0 0.0
    %416 = vmatpush1.xpose.msra.mxu0 0.0
    %417 = vmatprep.subr.mxu0 0.0
    %418 = vmatpush1.xpose.msra.mxu0 0.0
    %419 = vmatprep.subr.mxu0 0.0
    %420 = vmatpush1.xpose.msra.mxu0 0.0
    %421 = vmatprep.subr.mxu0 0.0
    %422 = vmatpush1.xpose.msra.mxu0 0.0
    %423 = vmatprep.subr.mxu0 0.0
    %424 = vmatpush1.xpose.msra.mxu0 0.0
    %425 = vmatprep.subr.mxu0 0.0
    %426 = vmatpush1.xpose.msra.mxu0 0.0
    %427 = vmatprep.subr.mxu0 0.0
    %428 = vmatpush1.xpose.msra.mxu0 0.0
    %429 = vmatprep.subr.mxu0 0.0
    %430 = vmatpush1.xpose.msra.mxu0 0.0
    %431 = vmatprep.subr.mxu0 0.0
    %432 = vmatpush1.xpose.msra.mxu0 0.0
    %433 = vmatprep.subr.mxu0 0.0
    %434 = vmatpush1.xpose.msra.mxu0 0.0
    %435 = vmatprep.subr.mxu0 0.0
    %436 = vmatpush1.xpose.msra.mxu0 0.0
    %437 = vmatprep.subr.mxu0 0.0
    %438 = vmatpush1.xpose.msra.mxu0 0.0
    %439 = vmatprep.subr.mxu0 0.0
    %440 = vmatpush1.xpose.msra.mxu0 0.0
    %441 = vmatprep.mubr.f32.mxu0 0.0
    %442 = vmatmul.mubr.f32.gmra.mrb[0].mxu0 %v348
    %v443 = vpop.f32.mrb[0].mxu0
    %v444 = vadd.f32 %v65, %v443
    %v445 = vpop.f32.mrb[0].mxu0
    %446 = vmatprep.mubr.f32.mxu0 0.0
    %447 = vmatmul.mubr.f32.gmra.mrb[0].mxu0 %v351
    %v448 = vpop.f32.mrb[0].mxu0
    %v449 = vadd.f32 %v66, %v448
    %v450 = vpop.f32.mrb[0].mxu0
    %451 = vdwg.mxu0
    %vm452 = vcmask 523264
    %v453 = vsel %vm452, %v444, -inf
    %454 = vmax.xlane.f32.xlu0 %v453
    %v455 = vpop.xlane.xlu0 %454
    %v456 = vsel %vm452, %v449, -inf
    %457 = vmax.xlane.f32.xlu0 %v456
    %v458 = vpop.xlane.xlu0 %457
    %v459 = vsub.f32 %v444, %v455
    %v460 = vsub.f32 %v449, %v458
    %v461 = vmul.f32 %v459, 1.442695
    %v462 = vpow.pop %v461
    %v463 = vmul.f32 %v460, 1.442695
    %v464 = vpow.pop %v463
    %v466 = vsel %vm452, %v462, 0
    %v469 = vsel %vm452, %v464, 0
    %471 = vmatprep.subr.mxu0 0.0
    %472 = vmatpush1.msra.mxu0 %v56
    %473 = vmatprep.subr.mxu0 0.0
    %474 = vmatpush1.msra.mxu0 %v57
    %475 = vmatprep.subr.mxu0 0.0
    %476 = vmatpush1.msra.mxu0 %v58
    %477 = vmatprep.subr.mxu0 0.0
    %478 = vmatpush1.msra.mxu0 %v59
    %479 = vmatprep.subr.mxu0 0.0
    %480 = vmatpush1.msra.mxu0 %v60
    %481 = vmatprep.subr.mxu0 0.0
    %482 = vmatpush1.msra.mxu0 %v61
    %483 = vmatprep.subr.mxu0 0.0
    %484 = vmatpush1.msra.mxu0 %v62
    %485 = vmatprep.subr.mxu0 0.0
    %486 = vmatpush1.msra.mxu0 %v63
    %487 = vmatprep.subr.mxu0 0.0
    %488 = vmatpush1.msra.mxu0 0.0
    %489 = vmatprep.subr.mxu0 0.0
    %490 = vmatpush1.msra.mxu0 0.0
    %491 = vmatprep.subr.mxu0 0.0
    %492 = vmatpush1.msra.mxu0 0.0
    %493 = vmatprep.subr.mxu0 0.0
    %494 = vmatpush1.msra.mxu0 0.0
    %495 = vmatprep.subr.mxu0 0.0
    %496 = vmatpush1.msra.mxu0 0.0
    %497 = vmatprep.subr.mxu0 0.0
    %498 = vmatpush1.msra.mxu0 0.0
    %499 = vmatprep.subr.mxu0 0.0
    %500 = vmatpush1.msra.mxu0 0.0
    %501 = vmatprep.subr.mxu0 0.0
    %502 = vmatpush1.msra.mxu0 0.0
    %503 = vmatprep.subr.mxu0 0.0
    %504 = vmatpush1.msra.mxu0 0.0
    %505 = vmatprep.subr.mxu0 0.0
    %506 = vmatpush1.msra.mxu0 0.0
    %507 = vmatprep.subr.mxu0 0.0
    %508 = vmatpush1.msra.mxu0 0.0
    %509 = vmatprep.subr.mxu0 0.0
    %510 = vmatpush1.msra.mxu0 0.0
    %511 = vmatprep.subr.mxu0 0.0
    %512 = vmatpush1.msra.mxu0 0.0
    %513 = vmatprep.subr.mxu0 0.0
    %514 = vmatpush1.msra.mxu0 0.0
    %515 = vmatprep.subr.mxu0 0.0
    %516 = vmatpush1.msra.mxu0 0.0
    %517 = vmatprep.subr.mxu0 0.0
    %518 = vmatpush1.msra.mxu0 0.0
    %519 = vmatprep.subr.mxu0 0.0
    %520 = vmatpush1.msra.mxu0 0.0
    %521 = vmatprep.subr.mxu0 0.0
    %522 = vmatpush1.msra.mxu0 0.0
    %523 = vmatprep.subr.mxu0 0.0
    %524 = vmatpush1.msra.mxu0 0.0
    %525 = vmatprep.subr.mxu0 0.0
    %526 = vmatpush1.msra.mxu0 0.0
    %527 = vmatprep.subr.mxu0 0.0
    %528 = vmatpush1.msra.mxu0 0.0
    %529 = vmatprep.subr.mxu0 0.0
    %530 = vmatpush1.msra.mxu0 0.0
    %531 = vmatprep.subr.mxu0 0.0
    %532 = vmatpush1.msra.mxu0 0.0
    %533 = vmatprep.subr.mxu0 0.0
    %534 = vmatpush1.msra.mxu0 0.0
    %535 = vmatprep.mubr.f32.mxu0 0.0
    %536 = vmatmul.mubr.f32.gmra.mrb[0].mxu0 %v466
    %v537 = vpop.f32.mrb[0].mxu0
    %v538 = vadd.f32 0.0, %v537
    %v539 = vpop.f32.mrb[0].mxu0
    %540 = vmatprep.mubr.f32.mxu0 0.0
    %541 = vmatmul.mubr.f32.gmra.mrb[0].mxu0 %v469
    %v542 = vpop.f32.mrb[0].mxu0
    %v543 = vadd.f32 0.0, %v542
    %v544 = vpop.f32.mrb[0].mxu0
    %545 = vdwg.mxu0
    %v546 = vrcp.pop %v538
    %v547 = vrcp.pop %v543
    %v548 = vmul.f32 %v462, %v546
    %v549 = vmul.f32 %v464, %v547
    %v551 = vsel %vm452, %v548, 0
    %v554 = vsel %vm452, %v549, 0
    %556 = vmatprep.subr.mxu0 0.0
    %557 = vmatpush1.msra.mxu0 %v339
    %558 = vmatprep.subr.mxu0 0.0
    %559 = vmatpush1.msra.mxu0 %v340
    %560 = vmatprep.subr.mxu0 0.0
    %561 = vmatpush1.msra.mxu0 %v341
    %562 = vmatprep.subr.mxu0 0.0
    %563 = vmatpush1.msra.mxu0 %v342
    %564 = vmatprep.subr.mxu0 0.0
    %565 = vmatpush1.msra.mxu0 %v343
    %566 = vmatprep.subr.mxu0 0.0
    %567 = vmatpush1.msra.mxu0 %v344
    %568 = vmatprep.subr.mxu0 0.0
    %569 = vmatpush1.msra.mxu0 %v345
    %570 = vmatprep.subr.mxu0 0.0
    %571 = vmatpush1.msra.mxu0 %v346
    %572 = vmatprep.subr.mxu0 0.0
    %573 = vmatpush1.msra.mxu0 0.0
    %574 = vmatprep.subr.mxu0 0.0
    %575 = vmatpush1.msra.mxu0 0.0
    %576 = vmatprep.subr.mxu0 0.0
    %577 = vmatpush1.msra.mxu0 0.0
    %578 = vmatprep.subr.mxu0 0.0
    %579 = vmatpush1.msra.mxu0 0.0
    %580 = vmatprep.subr.mxu0 0.0
    %581 = vmatpush1.msra.mxu0 0.0
    %582 = vmatprep.subr.mxu0 0.0
    %583 = vmatpush1.msra.mxu0 0.0
    %584 = vmatprep.subr.mxu0 0.0
    %585 = vmatpush1.msra.mxu0 0.0
    %586 = vmatprep.subr.mxu0 0.0
    %587 = vmatpush1.msra.mxu0 0.0
    %588 = vmatprep.subr.mxu0 0.0
    %589 = vmatpush1.msra.mxu0 0.0
    %590 = vmatprep.subr.mxu0 0.0
    %591 = vmatpush1.msra.mxu0 0.0
    %592 = vmatprep.subr.mxu0 0.0
    %593 = vmatpush1.msra.mxu0 0.0
    %594 = vmatprep.subr.mxu0 0.0
    %595 = vmatpush1.msra.mxu0 0.0
    %596 = vmatprep.subr.mxu0 0.0
    %597 = vmatpush1.msra.mxu0 0.0
    %598 = vmatprep.subr.mxu0 0.0
    %599 = vmatpush1.msra.mxu0 0.0
    %600 = vmatprep.subr.mxu0 0.0
    %601 = vmatpush1.msra.mxu0 0.0
    %602 = vmatprep.subr.mxu0 0.0
    %603 = vmatpush1.msra.mxu0 0.0
    %604 = vmatprep.subr.mxu0 0.0
    %605 = vmatpush1.msra.mxu0 0.0
    %606 = vmatprep.subr.mxu0 0.0
    %607 = vmatpush1.msra.mxu0 0.0
    %608 = vmatprep.subr.mxu0 0.0
    %609 = vmatpush1.msra.mxu0 0.0
    %610 = vmatprep.subr.mxu0 0.0
    %611 = vmatpush1.msra.mxu0 0.0
    %612 = vmatprep.subr.mxu0 0.0
    %613 = vmatpush1.msra.mxu0 0.0
    %614 = vmatprep.subr.mxu0 0.0
    %615 = vmatpush1.msra.mxu0 0.0
    %616 = vmatprep.subr.mxu0 0.0
    %617 = vmatpush1.msra.mxu0 0.0
    %618 = vmatprep.subr.mxu0 0.0
    %619 = vmatpush1.msra.mxu0 0.0
    %620 = vmatprep.mubr.f32.mxu0 0.0
    %621 = vmatmul.mubr.f32.gmra.mrb[0].mxu0 %v551
    %v622 = vpop.f32.mrb[0].mxu0
    %v623 = vadd.f32 0.0, %v622
    %v624 = vpop.f32.mrb[0].mxu0
    %625 = vmatprep.mubr.f32.mxu0 0.0
    %626 = vmatmul.mubr.f32.gmra.mrb[0].mxu0 %v554
    %v627 = vpop.f32.mrb[0].mxu0
    %v628 = vadd.f32 0.0, %v627
    %v629 = vpop.f32.mrb[0].mxu0
    %630 = vdwg.mxu0
    %s631 = scalar_lea.vmem %s1, 96
    %v632 = vld [vmem:[%s631] sm:$0xff]
    %v633 = vld [vmem:[%s631 + $0x8] sm:$0xff]
    %v634 = vld [vmem:[%s631 + $0x10] sm:$0xff]
    %v635 = vld [vmem:[%s631 + $0x18] sm:$0xff]
    %v637 = vlaneseq
    %v638 = vshrl.u32 %v637, 7
    %v639 = vsub.s32 0, %v638
    %v640 = vrot.slane %v35, %v639
    %v643 = vsel %vm77, %v623, 0
    %v646 = vsel %vm77, %v628, 0
    %648 = vmatprep.subr.mxu0 0.0
    %649 = vmatpush1.msra.mxu0 %v632
    %650 = vmatprep.subr.mxu0 0.0
    %651 = vmatpush1.msra.mxu0 %v633
    %652 = vmatprep.subr.mxu0 0.0
    %653 = vmatpush1.msra.mxu0 %v634
    %654 = vmatprep.subr.mxu0 0.0
    %655 = vmatpush1.msra.mxu0 %v635
    %656 = vmatprep.subr.mxu0 0.0
    %657 = vmatpush1.msra.mxu0 0.0
    %658 = vmatprep.subr.mxu0 0.0
    %659 = vmatpush1.msra.mxu0 0.0
    %660 = vmatprep.subr.mxu0 0.0
    %661 = vmatpush1.msra.mxu0 0.0
    %662 = vmatprep.subr.mxu0 0.0
    %663 = vmatpush1.msra.mxu0 0.0
    %664 = vmatprep.subr.mxu0 0.0
    %665 = vmatpush1.msra.mxu0 0.0
    %666 = vmatprep.subr.mxu0 0.0
    %667 = vmatpush1.msra.mxu0 0.0
    %668 = vmatprep.subr.mxu0 0.0
    %669 = vmatpush1.msra.mxu0 0.0
    %670 = vmatprep.subr.mxu0 0.0
    %671 = vmatpush1.msra.mxu0 0.0
    %672 = vmatprep.subr.mxu0 0.0
    %673 = vmatpush1.msra.mxu0 0.0
    %674 = vmatprep.subr.mxu0 0.0
    %675 = vmatpush1.msra.mxu0 0.0
    %676 = vmatprep.subr.mxu0 0.0
    %677 = vmatpush1.msra.mxu0 0.0
    %678 = vmatprep.subr.mxu0 0.0
    %679 = vmatpush1.msra.mxu0 0.0
    %680 = vmatprep.subr.mxu0 0.0
    %681 = vmatpush1.msra.mxu0 0.0
    %682 = vmatprep.subr.mxu0 0.0
    %683 = vmatpush1.msra.mxu0 0.0
    %684 = vmatprep.subr.mxu0 0.0
    %685 = vmatpush1.msra.mxu0 0.0
    %686 = vmatprep.subr.mxu0 0.0
    %687 = vmatpush1.msra.mxu0 0.0
    %688 = vmatprep.subr.mxu0 0.0
    %689 = vmatpush1.msra.mxu0 0.0
    %690 = vmatprep.subr.mxu0 0.0
    %691 = vmatpush1.msra.mxu0 0.0
    %692 = vmatprep.subr.mxu0 0.0
    %693 = vmatpush1.msra.mxu0 0.0
    %694 = vmatprep.subr.mxu0 0.0
    %695 = vmatpush1.msra.mxu0 0.0
    %696 = vmatprep.subr.mxu0 0.0
    %697 = vmatpush1.msra.mxu0 0.0
    %698 = vmatprep.subr.mxu0 0.0
    %699 = vmatpush1.msra.mxu0 0.0
    %700 = vmatprep.subr.mxu0 0.0
    %701 = vmatpush1.msra.mxu0 0.0
    %702 = vmatprep.subr.mxu0 0.0
    %703 = vmatpush1.msra.mxu0 0.0
    %704 = vmatprep.subr.mxu0 0.0
    %705 = vmatpush1.msra.mxu0 0.0
    %706 = vmatprep.subr.mxu0 0.0
    %707 = vmatpush1.msra.mxu0 0.0
    %708 = vmatprep.subr.mxu0 0.0
    %709 = vmatpush1.msra.mxu0 0.0
    %710 = vmatprep.subr.mxu0 0.0
    %711 = vmatpush1.msra.mxu0 0.0
    %712 = vmatprep.mubr.f32.mxu0 0.0
    %713 = vmatmul.mubr.f32.gmra.mrb[0].mxu0 %v643
    %v714 = vpop.f32.mrb[0].mxu0
    %v715 = vadd.f32 %v640, %v714
    %v716 = vpop.f32.mrb[0].mxu0
    %717 = vmatprep.mubr.f32.mxu0 0.0
    %718 = vmatmul.mubr.f32.gmra.mrb[0].mxu0 %v646
    %v719 = vpop.f32.mrb[0].mxu0
    %v720 = vadd.f32 %v640, %v719
    %v721 = vpop.f32.mrb[0].mxu0
    %722 = vdwg.mxu0
    %v723 = vadd.f32 %v27, %v715
    %v724 = vadd.f32 %v28, %v720
    %v725 = vsel %vm77, %v723, 0.0
    %726 = vadd.xlane.f32.xlu0 %v725
    %v727 = vpop.xlane.xlu0 %726
    %v728 = vsel %vm77, %v724, 0.0
    %729 = vadd.xlane.f32.xlu0 %v728
    %v730 = vpop.xlane.xlu0 %729
    %v731 = vrcp.pop 32.0
    %v732 = vmul.f32 %v727, %v731
    %v733 = vmul.f32 %v730, %v731
    %v734 = vsub.f32 %v723, %v732
    %v735 = vsub.f32 %v724, %v733
    %v736 = vmul.f32 %v734, %v734
    %v737 = vmul.f32 %v735, %v735
    %v738 = vsel %vm77, %v736, 0.0
    %739 = vadd.xlane.f32.xlu0 %v738
    %v740 = vpop.xlane.xlu0 %739
    %v741 = vsel %vm77, %v737, 0.0
    %742 = vadd.xlane.f32.xlu0 %v741
    %v743 = vpop.xlane.xlu0 %742
    %v744 = vmul.f32 %v740, %v731
    %v745 = vmul.f32 %v743, %v731
    %v746 = vadd.f32 %v744, 1e-05
    %v747 = vadd.f32 %v745, 1e-05
    %v748 = vrsqrt.pop %v746
    %v749 = vrsqrt.pop %v747
    %v750 = vmul.f32 %v734, %v748
    %v751 = vmul.f32 %v735, %v749
    %v753 = vlaneseq
    %v754 = vshrl.u32 %v753, 7
    %v755 = vsub.s32 0, %v754
    %v756 = vrot.slane %v39, %v755
    %v758 = vmul.f32 %v750, %v756
    %v759 = vmul.f32 %v751, %v756
    %v761 = vlaneseq
    %v762 = vshrl.u32 %v761, 7
    %v763 = vsub.s32 0, %v762
    %v764 = vrot.slane %v41, %v763
    %v766 = vadd.f32 %v758, %v764
    %v767 = vadd.f32 %v759, %v764
    %v768 = vld [vmem:[%s2] sm:$0xff]
    %v769 = vld [vmem:[%s2 + $0x8] sm:$0xff]
    %v770 = vld [vmem:[%s2 + $0x10] sm:$0xff]
    %v771 = vld [vmem:[%s2 + $0x18] sm:$0xff]
    %v773 = vlaneseq
    %v774 = vshrl.u32 %v773, 7
    %v775 = vsub.s32 0, %v774
    %v776 = vrot.slane %v46, %v775
    %v779 = vsel %vm77, %v766, 0
    %v782 = vsel %vm77, %v767, 0
    %784 = vmatprep.subr.mxu0 0.0
    %785 = vmatpush1.msra.mxu0 %v768
    %786 = vmatprep.subr.mxu0 0.0
    %787 = vmatpush1.msra.mxu0 %v769
    %788 = vmatprep.subr.mxu0 0.0
    %789 = vmatpush1.msra.mxu0 %v770
    %790 = vmatprep.subr.mxu0 0.0
    %791 = vmatpush1.msra.mxu0 %v771
    %792 = vmatprep.subr.mxu0 0.0
    %793 = vmatpush1.msra.mxu0 0.0
    %794 = vmatprep.subr.mxu0 0.0
    %795 = vmatpush1.msra.mxu0 0.0
    %796 = vmatprep.subr.mxu0 0.0
    %797 = vmatpush1.msra.mxu0 0.0
    %798 = vmatprep.subr.mxu0 0.0
    %799 = vmatpush1.msra.mxu0 0.0
    %800 = vmatprep.subr.mxu0 0.0
    %801 = vmatpush1.msra.mxu0 0.0
    %802 = vmatprep.subr.mxu0 0.0
    %803 = vmatpush1.msra.mxu0 0.0
    %804 = vmatprep.subr.mxu0 0.0
    %805 = vmatpush1.msra.mxu0 0.0
    %806 = vmatprep.subr.mxu0 0.0
    %807 = vmatpush1.msra.mxu0 0.0
    %808 = vmatprep.subr.mxu0 0.0
    %809 = vmatpush1.msra.mxu0 0.0
    %810 = vmatprep.subr.mxu0 0.0
    %811 = vmatpush1.msra.mxu0 0.0
    %812 = vmatprep.subr.mxu0 0.0
    %813 = vmatpush1.msra.mxu0 0.0
    %814 = vmatprep.subr.mxu0 0.0
    %815 = vmatpush1.msra.mxu0 0.0
    %816 = vmatprep.subr.mxu0 0.0
    %817 = vmatpush1.msra.mxu0 0.0
    %818 = vmatprep.subr.mxu0 0.0
    %819 = vmatpush1.msra.mxu0 0.0
    %820 = vmatprep.subr.mxu0 0.0
    %821 = vmatpush1.msra.mxu0 0.0
    %822 = vmatprep.subr.mxu0 0.0
    %823 = vmatpush1.msra.mxu0 0.0
    %824 = vmatprep.subr.mxu0 0.0
    %825 = vmatpush1.msra.mxu0 0.0
    %826 = vmatprep.subr.mxu0 0.0
    %827 = vmatpush1.msra.mxu0 0.0
    %828 = vmatprep.subr.mxu0 0.0
    %829 = vmatpush1.msra.mxu0 0.0
    %830 = vmatprep.subr.mxu0 0.0
    %831 = vmatpush1.msra.mxu0 0.0
    %832 = vmatprep.subr.mxu0 0.0
    %833 = vmatpush1.msra.mxu0 0.0
    %834 = vmatprep.subr.mxu0 0.0
    %835 = vmatpush1.msra.mxu0 0.0
    %836 = vmatprep.subr.mxu0 0.0
    %837 = vmatpush1.msra.mxu0 0.0
    %838 = vmatprep.subr.mxu0 0.0
    %839 = vmatpush1.msra.mxu0 0.0
    %840 = vmatprep.subr.mxu0 0.0
    %841 = vmatpush1.msra.mxu0 0.0
    %842 = vmatprep.subr.mxu0 0.0
    %843 = vmatpush1.msra.mxu0 0.0
    %844 = vmatprep.subr.mxu0 0.0
    %845 = vmatpush1.msra.mxu0 0.0
    %846 = vmatprep.subr.mxu0 0.0
    %847 = vmatpush1.msra.mxu0 0.0
    %848 = vmatprep.mubr.f32.mxu0 0.0
    %849 = vmatmul.mubr.f32.gmra.mrb[0].mxu0 %v779
    %v850 = vpop.f32.mrb[0].mxu0
    %v851 = vadd.f32 %v776, %v850
    %v852 = vpop.f32.mrb[0].mxu0
    %853 = vmatprep.mubr.f32.mxu0 0.0
    %854 = vmatmul.mubr.f32.gmra.mrb[0].mxu0 %v782
    %v855 = vpop.f32.mrb[0].mxu0
    %v856 = vadd.f32 %v776, %v855
    %v857 = vpop.f32.mrb[0].mxu0
    %858 = vdwg.mxu0
    %v859 = vmax.f32 %v851, 0.0
    %v860 = vmax.f32 %v856, 0.0
    %v861 = vld [vmem:[%s3] sm:$0xff]
    %v862 = vld [vmem:[%s3 + $0x8] sm:$0xff]
    %v863 = vld [vmem:[%s3 + $0x10] sm:$0xff]
    %v864 = vld [vmem:[%s3 + $0x18] sm:$0xff]
    %v865 = vld [vmem:[%s3 + $0x20] sm:$0xff]
    %v866 = vld [vmem:[%s3 + $0x28] sm:$0xff]
    %v867 = vld [vmem:[%s3 + $0x30] sm:$0xff]
    %v868 = vld [vmem:[%s3 + $0x38] sm:$0xff]
    %v870 = vlaneseq
    %v871 = vshrl.u32 %v870, 7
    %v872 = vsub.s32 0, %v871
    %v873 = vrot.slane %v37, %v872
    %v876 = vsel %vm452, %v859, 0
    %v879 = vsel %vm452, %v860, 0
    %881 = vmatprep.subr.mxu0 0.0
    %882 = vmatpush1.msra.mxu0 %v861
    %883 = vmatprep.subr.mxu0 0.0
    %884 = vmatpush1.msra.mxu0 %v862
    %885 = vmatprep.subr.mxu0 0.0
    %886 = vmatpush1.msra.mxu0 %v863
    %887 = vmatprep.subr.mxu0 0.0
    %888 = vmatpush1.msra.mxu0 %v864
    %889 = vmatprep.subr.mxu0 0.0
    %890 = vmatpush1.msra.mxu0 %v865
    %891 = vmatprep.subr.mxu0 0.0
    %892 = vmatpush1.msra.mxu0 %v866
    %893 = vmatprep.subr.mxu0 0.0
    %894 = vmatpush1.msra.mxu0 %v867
    %895 = vmatprep.subr.mxu0 0.0
    %896 = vmatpush1.msra.mxu0 %v868
    %897 = vmatprep.subr.mxu0 0.0
    %898 = vmatpush1.msra.mxu0 0.0
    %899 = vmatprep.subr.mxu0 0.0
    %900 = vmatpush1.msra.mxu0 0.0
    %901 = vmatprep.subr.mxu0 0.0
    %902 = vmatpush1.msra.mxu0 0.0
    %903 = vmatprep.subr.mxu0 0.0
    %904 = vmatpush1.msra.mxu0 0.0
    %905 = vmatprep.subr.mxu0 0.0
    %906 = vmatpush1.msra.mxu0 0.0
    %907 = vmatprep.subr.mxu0 0.0
    %908 = vmatpush1.msra.mxu0 0.0
    %909 = vmatprep.subr.mxu0 0.0
    %910 = vmatpush1.msra.mxu0 0.0
    %911 = vmatprep.subr.mxu0 0.0
    %912 = vmatpush1.msra.mxu0 0.0
    %913 = vmatprep.subr.mxu0 0.0
    %914 = vmatpush1.msra.mxu0 0.0
    %915 = vmatprep.subr.mxu0 0.0
    %916 = vmatpush1.msra.mxu0 0.0
    %917 = vmatprep.subr.mxu0 0.0
    %918 = vmatpush1.msra.mxu0 0.0
    %919 = vmatprep.subr.mxu0 0.0
    %920 = vmatpush1.msra.mxu0 0.0
    %921 = vmatprep.subr.mxu0 0.0
    %922 = vmatpush1.msra.mxu0 0.0
    %923 = vmatprep.subr.mxu0 0.0
    %924 = vmatpush1.msra.mxu0 0.0
    %925 = vmatprep.subr.mxu0 0.0
    %926 = vmatpush1.msra.mxu0 0.0
    %927 = vmatprep.subr.mxu0 0.0
    %928 = vmatpush1.msra.mxu0 0.0
    %929 = vmatprep.subr.mxu0 0.0
    %930 = vmatpush1.msra.mxu0 0.0
    %931 = vmatprep.subr.mxu0 0.0
    %932 = vmatpush1.msra.mxu0 0.0
    %933 = vmatprep.subr.mxu0 0.0
    %934 = vmatpush1.msra.mxu0 0.0
    %935 = vmatprep.subr.mxu0 0.0
    %936 = vmatpush1.msra.mxu0 0.0
    %937 = vmatprep.subr.mxu0 0.0
    %938 = vmatpush1.msra.mxu0 0.0
    %939 = vmatprep.subr.mxu0 0.0
    %940 = vmatpush1.msra.mxu0 0.0
    %941 = vmatprep.subr.mxu0 0.0
    %942 = vmatpush1.msra.mxu0 0.0
    %943 = vmatprep.subr.mxu0 0.0
    %944 = vmatpush1.msra.mxu0 0.0
    %945 = vmatprep.mubr.f32.mxu0 0.0
    %946 = vmatmul.mubr.f32.gmra.mrb[0].mxu0 %v876
    %v947 = vpop.f32.mrb[0].mxu0
    %v948 = vadd.f32 %v873, %v947
    %v949 = vpop.f32.mrb[0].mxu0
    %950 = vmatprep.mubr.f32.mxu0 0.0
    %951 = vmatmul.mubr.f32.gmra.mrb[0].mxu0 %v879
    %v952 = vpop.f32.mrb[0].mxu0
    %v953 = vadd.f32 %v873, %v952
    %v954 = vpop.f32.mrb[0].mxu0
    %955 = vdwg.mxu0
    %v956 = vadd.f32 %v766, %v948
    %v957 = vadd.f32 %v767, %v953
    %v958 = vsel %vm77, %v956, 0.0
    %959 = vadd.xlane.f32.xlu0 %v958
    %v960 = vpop.xlane.xlu0 %959
    %v961 = vsel %vm77, %v957, 0.0
    %962 = vadd.xlane.f32.xlu0 %v961
    %v963 = vpop.xlane.xlu0 %962
    %v964 = vmul.f32 %v960, %v731
    %v965 = vmul.f32 %v963, %v731
    %v966 = vsub.f32 %v956, %v964
    %v967 = vsub.f32 %v957, %v965
    %v968 = vmul.f32 %v966, %v966
    %v969 = vmul.f32 %v967, %v967
    %v970 = vsel %vm77, %v968, 0.0
    %971 = vadd.xlane.f32.xlu0 %v970
    %v972 = vpop.xlane.xlu0 %971
    %v973 = vsel %vm77, %v969, 0.0
    %974 = vadd.xlane.f32.xlu0 %v973
    %v975 = vpop.xlane.xlu0 %974
    %v976 = vmul.f32 %v972, %v731
    %v977 = vmul.f32 %v975, %v731
    %v978 = vadd.f32 %v976, 1e-05
    %v979 = vadd.f32 %v977, 1e-05
    %v980 = vrsqrt.pop %v978
    %v981 = vrsqrt.pop %v979
    %v982 = vmul.f32 %v966, %v980
    %v983 = vmul.f32 %v967, %v981
    %v985 = vlaneseq
    %v986 = vshrl.u32 %v985, 7
    %v987 = vsub.s32 0, %v986
    %v988 = vrot.slane %v43, %v987
    %v990 = vmul.f32 %v982, %v988
    %v991 = vmul.f32 %v983, %v988
    %v993 = vlaneseq
    %v994 = vshrl.u32 %v993, 7
    %v995 = vsub.s32 0, %v994
    %v996 = vrot.slane %v45, %v995
    %v998 = vadd.f32 %v990, %v996
    %v999 = vadd.f32 %v991, %v996
    %1000 = vst.msk [vmem:[#allocation2] sm:$0xff] %vm77, %v998
    %1001 = vst.msk [vmem:[#allocation2 + $0x8] sm:$0xff] %vm77, %v999
    // Predicated region
    $region30: #{transformer_encoder_layer.1} parent=1 // pred_check
      _
    $region31: #{transformer_encoder_layer.1} parent=1 // pred_check_branch
      %1003 = sbr.rel (0) target = $region33
    $region32: #{transformer_encoder_layer.1} parent=1 // pred_region
      %s1005 = ssub.s32 256, 256
      %1006 = vsyncadd [#allocation3], %s1005
      %s1007 = sshll.u32 [#allocation2], 4
      %s1008 = int_to_ptr.vmem [resolvable:$true] %s1007
      %1013 = dma.vmem_to_hbm [thread:$0]  %s1008, 256, %s7, [#allocation3], 128, 128, 8
    $region33: #{transformer_encoder_layer.1} parent=1 // pred_fallthru
      _
    // Predicated region
    $region34: #{transformer_encoder_layer.1} parent=1 // pred_check
      _
    $region35: #{transformer_encoder_layer.1} parent=1 // pred_check_branch
      %1015 = sbr.rel (0) target = $region37
    $region36: #{transformer_encoder_layer.1} parent=1 // pred_region
      %1016 = dma.done [#allocation3], 256
    $region37: #{transformer_encoder_layer.1} parent=1 // pred_fallthru
      _
    %1017 = vsyncpa [#allocation3], 1

</llo_original>
